<compile_context>
chip_gen: v5e
topology: v5e:2x2
jax: 0.10.0
libtpu: 0.0.40
codegen_flags: <defaults>
</compile_context>

<pallas_src>
import jax
import jax.numpy as jnp
from jax.experimental import pallas as pl
from jax.experimental.pallas import tpu as pltpu


def basic_block_forward(x_nchw, w_oihw, b):
    """Matches BasicBlock.forward: cat([x, relu(conv3x3(x))], dim=1); NCHW in/out."""
    N, Cin, H, W = x_nchw.shape
    Cout = w_oihw.shape[0]
    HW = H * W
    Ctot = Cin + Cout
    out_dtype = x_nchw.dtype

    # Free (minor-dim merge) reshape: (N, Cin, H, W) -> (N, Cin, H*W).
    x_flat = x_nchw.reshape(N, Cin, HW)
    # im2col weight matrix: w_mat[co, (ky*3 + kx)*Cin + ci] = w[co, ci, ky, kx]
    w_mat = jnp.transpose(w_oihw, (0, 2, 3, 1)).reshape(Cout, 9 * Cin)
    b_col = b.reshape(Cout, 1)
    # Flat-position (row, col) indices, used only for the zero-pad border masks.
    rows = jnp.repeat(jnp.arange(H, dtype=jnp.int32), W)
    cols = jnp.tile(jnp.arange(W, dtype=jnp.int32), H)
    rowcol = jnp.stack([rows, cols], axis=0)                # (2, HW)

    def kernel(rc_ref, x_ref, w_ref, b_ref, o_ref):
        # rc_ref: (2, HW) int32   x_ref: (1, Cin, HW)
        # w_ref : (Cout, 9*Cin)   b_ref: (Cout, 1)   o_ref: (1, Cin+Cout, HW)
        x = x_ref[0]                                        # (Cin, HW)
        rc = rc_ref[...]
        yy = rc[0:1, :]                                     # (1, HW)
        xx = rc[1:2, :]                                     # (1, HW)

        # Build the (9*Cin, HW) im2col patch matrix: XLU rolls + border masks.
        patches = []
        for ky in range(3):
            for kx in range(3):
                dy, dx = ky - 1, kx - 1
                d = dy * W + dx
                shifted = x if d == 0 else pltpu.roll(x, shift=(-d) % HW, axis=1)
                valid = ((yy + dy >= 0) & (yy + dy < H) &
                         (xx + dx >= 0) & (xx + dx < W))    # (1, HW) bool
                patches.append(jnp.where(valid, shifted, 0.0))
        patch = jnp.concatenate(patches, axis=0)            # (9*Cin, HW)

        # Single MXU contraction (K = 9*Cin), f32 accumulation, bias + ReLU.
        acc = jnp.dot(w_ref[...], patch, preferred_element_type=jnp.float32)
        acc = jnp.maximum(acc + b_ref[...], 0.0)            # (Cout, HW)

        # Fused channel concat: [x ; relu(conv(x))], one lane-dense store.
        o_ref[0] = jnp.concatenate(
            [x.astype(out_dtype), acc.astype(out_dtype)], axis=0)

    out_flat = pl.pallas_call(
        kernel,
        out_shape=jax.ShapeDtypeStruct((N, Ctot, HW), out_dtype),
        grid_spec=pltpu.PrefetchScalarGridSpec(
            num_scalar_prefetch=0,
            grid=(N,),
            in_specs=[
                pl.BlockSpec((2, HW), lambda n: (0, 0)),
                pl.BlockSpec((1, Cin, HW), lambda n: (n, 0, 0)),
                pl.BlockSpec((Cout, 9 * Cin), lambda n: (0, 0)),
                pl.BlockSpec((Cout, 1), lambda n: (0, 0)),
            ],
            out_specs=pl.BlockSpec((1, Ctot, HW), lambda n: (n, 0, 0)),
        ),
        compiler_params=pltpu.CompilerParams(
            dimension_semantics=("parallel",)),
    )(rowcol, x_flat, w_mat, b_col)

    # Free (minor-dim split) reshape back to NCHW.
    return out_flat.reshape(N, Ctot, H, W)


if __name__ == "__main__":
    # Small shapes consistent with the module: input_dim=4, output_dim=8.
    N, Cin, H, W = 2, 4, 16, 16
    Cout = 8

    key = jax.random.PRNGKey(0)
    kx, kw, kb = jax.random.split(key, 3)
    x = jax.random.normal(kx, (N, Cin, H, W), dtype=jnp.float32)
    # Deterministic synthetic parameters (OIHW like nn.Conv2d.weight).
    w = jax.random.normal(kw, (Cout, Cin, 3, 3), dtype=jnp.float32) * 0.1
    b = jax.random.normal(kb, (Cout,), dtype=jnp.float32) * 0.1

    fwd = jax.jit(basic_block_forward)
    y = jax.block_until_ready(fwd(x, w, b))
    assert y.shape == (N, Cin + Cout, H, W)

    # Reference check against XLA conv (NCHW, OIHW).
    ref_conv = jax.lax.conv_general_dilated(
        x, w, window_strides=(1, 1), padding=((1, 1), (1, 1)),
        dimension_numbers=("NCHW", "OIHW", "NCHW"))
    ref = jnp.concatenate(
        (x, jnp.maximum(ref_conv + b[None, :, None, None], 0.0)), axis=1)
    assert jnp.allclose(y, ref, atol=1e-4, rtol=1e-4), "mismatch vs reference"

    print("KERNEL_OK")
</pallas_src>

<mosaic_0001>
module attributes {stable_mosaic.version = 11 : i64} {
  func.func @kernel(%arg0: i32, %arg1: memref<2x256xi32, #tpu.memory_space<vmem>>, %arg2: memref<1x4x256xf32, #tpu.memory_space<vmem>>, %arg3: memref<8x36xf32, #tpu.memory_space<vmem>>, %arg4: memref<8x1xf32, #tpu.memory_space<vmem>>, %arg5: memref<1x12x256xf32, #tpu.memory_space<vmem>>) attributes {dimension_semantics = [#tpu.dimension_semantics<parallel>], iteration_bounds = array<i64: 2>, scalar_prefetch = 0 : i64, scratch_operands = 0 : i64, tpu.core_type = #tpu.core_type<tc>, window_params = [{pipeline_mode = #tpu.pipeline_mode<synchronous>, transform_indices = @transform_0, window_bounds = array<i64: 2, 256>}, {transform_indices = @transform_1, window_bounds = array<i64: 1, 4, 256>}, {pipeline_mode = #tpu.pipeline_mode<synchronous>, transform_indices = @transform_2, window_bounds = array<i64: 8, 36>}, {pipeline_mode = #tpu.pipeline_mode<synchronous>, transform_indices = @transform_3, window_bounds = array<i64: 8, 1>}, {transform_indices = @transform_4, window_bounds = array<i64: 1, 12, 256>}]} {
    %c0 = arith.constant 0 : index
    %c0_0 = arith.constant 0 : index
    %c0_1 = arith.constant 0 : index
    %0 = vector.load %arg2[%c0, %c0_0, %c0_1] : memref<1x4x256xf32, #tpu.memory_space<vmem>>, vector<1x4x256xf32>
    %1 = vector.shape_cast %0 : vector<1x4x256xf32> to vector<4x256xf32>
    %c0_2 = arith.constant 0 : index
    %c0_3 = arith.constant 0 : index
    %2 = vector.load %arg1[%c0_2, %c0_3] : memref<2x256xi32, #tpu.memory_space<vmem>>, vector<2x256xi32>
    %3 = vector.extract_strided_slice %2 {offsets = [0, 0], sizes = [1, 256], strides = [1, 1]} : vector<2x256xi32> to vector<1x256xi32>
    %4 = vector.extract_strided_slice %2 {offsets = [1, 0], sizes = [1, 256], strides = [1, 1]} : vector<2x256xi32> to vector<1x256xi32>
    %c17_i32 = arith.constant 17 : i32
    %5 = tpu.dynamic_rotate %1 by %c17_i32 dim 1 : vector<4x256xf32>, i32 -> vector<4x256xf32>
    %c-1_i32 = arith.constant -1 : i32
    %6 = vector.broadcast %c-1_i32 : i32 to vector<1x256xi32>
    %7 = arith.addi %3, %6 : vector<1x256xi32>
    %c0_i32 = arith.constant 0 : i32
    %8 = vector.broadcast %c0_i32 : i32 to vector<1x256xi32>
    %9 = arith.cmpi sge, %7, %8 : vector<1x256xi32>
    %c-1_i32_4 = arith.constant -1 : i32
    %10 = vector.broadcast %c-1_i32_4 : i32 to vector<1x256xi32>
    %11 = arith.addi %3, %10 : vector<1x256xi32>
    %c16_i32 = arith.constant 16 : i32
    %12 = vector.broadcast %c16_i32 : i32 to vector<1x256xi32>
    %13 = arith.cmpi slt, %11, %12 : vector<1x256xi32>
    %14 = arith.andi %9, %13 : vector<1x256xi1>
    %c-1_i32_5 = arith.constant -1 : i32
    %15 = vector.broadcast %c-1_i32_5 : i32 to vector<1x256xi32>
    %16 = arith.addi %4, %15 : vector<1x256xi32>
    %c0_i32_6 = arith.constant 0 : i32
    %17 = vector.broadcast %c0_i32_6 : i32 to vector<1x256xi32>
    %18 = arith.cmpi sge, %16, %17 : vector<1x256xi32>
    %19 = arith.andi %14, %18 : vector<1x256xi1>
    %c-1_i32_7 = arith.constant -1 : i32
    %20 = vector.broadcast %c-1_i32_7 : i32 to vector<1x256xi32>
    %21 = arith.addi %4, %20 : vector<1x256xi32>
    %c16_i32_8 = arith.constant 16 : i32
    %22 = vector.broadcast %c16_i32_8 : i32 to vector<1x256xi32>
    %23 = arith.cmpi slt, %21, %22 : vector<1x256xi32>
    %24 = arith.andi %19, %23 : vector<1x256xi1>
    %cst = arith.constant 0.000000e+00 : f32
    %25 = vector.shape_cast %24 : vector<1x256xi1> to vector<1x256xi1>
    %26 = vector.broadcast %25 : vector<1x256xi1> to vector<4x256xi1>
    %27 = vector.broadcast %cst : f32 to vector<4x256xf32>
    %28 = arith.select %26, %5, %27 : vector<4x256xi1>, vector<4x256xf32>
    %c16_i32_9 = arith.constant 16 : i32
    %29 = tpu.dynamic_rotate %1 by %c16_i32_9 dim 1 : vector<4x256xf32>, i32 -> vector<4x256xf32>
    %c-1_i32_10 = arith.constant -1 : i32
    %30 = vector.broadcast %c-1_i32_10 : i32 to vector<1x256xi32>
    %31 = arith.addi %3, %30 : vector<1x256xi32>
    %c0_i32_11 = arith.constant 0 : i32
    %32 = vector.broadcast %c0_i32_11 : i32 to vector<1x256xi32>
    %33 = arith.cmpi sge, %31, %32 : vector<1x256xi32>
    %c-1_i32_12 = arith.constant -1 : i32
    %34 = vector.broadcast %c-1_i32_12 : i32 to vector<1x256xi32>
    %35 = arith.addi %3, %34 : vector<1x256xi32>
    %c16_i32_13 = arith.constant 16 : i32
    %36 = vector.broadcast %c16_i32_13 : i32 to vector<1x256xi32>
    %37 = arith.cmpi slt, %35, %36 : vector<1x256xi32>
    %38 = arith.andi %33, %37 : vector<1x256xi1>
    %c0_i32_14 = arith.constant 0 : i32
    %39 = vector.broadcast %c0_i32_14 : i32 to vector<1x256xi32>
    %40 = arith.addi %4, %39 : vector<1x256xi32>
    %c0_i32_15 = arith.constant 0 : i32
    %41 = vector.broadcast %c0_i32_15 : i32 to vector<1x256xi32>
    %42 = arith.cmpi sge, %40, %41 : vector<1x256xi32>
    %43 = arith.andi %38, %42 : vector<1x256xi1>
    %c0_i32_16 = arith.constant 0 : i32
    %44 = vector.broadcast %c0_i32_16 : i32 to vector<1x256xi32>
    %45 = arith.addi %4, %44 : vector<1x256xi32>
    %c16_i32_17 = arith.constant 16 : i32
    %46 = vector.broadcast %c16_i32_17 : i32 to vector<1x256xi32>
    %47 = arith.cmpi slt, %45, %46 : vector<1x256xi32>
    %48 = arith.andi %43, %47 : vector<1x256xi1>
    %cst_18 = arith.constant 0.000000e+00 : f32
    %49 = vector.shape_cast %48 : vector<1x256xi1> to vector<1x256xi1>
    %50 = vector.broadcast %49 : vector<1x256xi1> to vector<4x256xi1>
    %51 = vector.broadcast %cst_18 : f32 to vector<4x256xf32>
    %52 = arith.select %50, %29, %51 : vector<4x256xi1>, vector<4x256xf32>
    %c15_i32 = arith.constant 15 : i32
    %53 = tpu.dynamic_rotate %1 by %c15_i32 dim 1 : vector<4x256xf32>, i32 -> vector<4x256xf32>
    %c-1_i32_19 = arith.constant -1 : i32
    %54 = vector.broadcast %c-1_i32_19 : i32 to vector<1x256xi32>
    %55 = arith.addi %3, %54 : vector<1x256xi32>
    %c0_i32_20 = arith.constant 0 : i32
    %56 = vector.broadcast %c0_i32_20 : i32 to vector<1x256xi32>
    %57 = arith.cmpi sge, %55, %56 : vector<1x256xi32>
    %c-1_i32_21 = arith.constant -1 : i32
    %58 = vector.broadcast %c-1_i32_21 : i32 to vector<1x256xi32>
    %59 = arith.addi %3, %58 : vector<1x256xi32>
    %c16_i32_22 = arith.constant 16 : i32
    %60 = vector.broadcast %c16_i32_22 : i32 to vector<1x256xi32>
    %61 = arith.cmpi slt, %59, %60 : vector<1x256xi32>
    %62 = arith.andi %57, %61 : vector<1x256xi1>
    %c1_i32 = arith.constant 1 : i32
    %63 = vector.broadcast %c1_i32 : i32 to vector<1x256xi32>
    %64 = arith.addi %4, %63 : vector<1x256xi32>
    %c0_i32_23 = arith.constant 0 : i32
    %65 = vector.broadcast %c0_i32_23 : i32 to vector<1x256xi32>
    %66 = arith.cmpi sge, %64, %65 : vector<1x256xi32>
    %67 = arith.andi %62, %66 : vector<1x256xi1>
    %c1_i32_24 = arith.constant 1 : i32
    %68 = vector.broadcast %c1_i32_24 : i32 to vector<1x256xi32>
    %69 = arith.addi %4, %68 : vector<1x256xi32>
    %c16_i32_25 = arith.constant 16 : i32
    %70 = vector.broadcast %c16_i32_25 : i32 to vector<1x256xi32>
    %71 = arith.cmpi slt, %69, %70 : vector<1x256xi32>
    %72 = arith.andi %67, %71 : vector<1x256xi1>
    %cst_26 = arith.constant 0.000000e+00 : f32
    %73 = vector.shape_cast %72 : vector<1x256xi1> to vector<1x256xi1>
    %74 = vector.broadcast %73 : vector<1x256xi1> to vector<4x256xi1>
    %75 = vector.broadcast %cst_26 : f32 to vector<4x256xf32>
    %76 = arith.select %74, %53, %75 : vector<4x256xi1>, vector<4x256xf32>
    %c1_i32_27 = arith.constant 1 : i32
    %77 = tpu.dynamic_rotate %1 by %c1_i32_27 dim 1 : vector<4x256xf32>, i32 -> vector<4x256xf32>
    %c0_i32_28 = arith.constant 0 : i32
    %78 = vector.broadcast %c0_i32_28 : i32 to vector<1x256xi32>
    %79 = arith.addi %3, %78 : vector<1x256xi32>
    %c0_i32_29 = arith.constant 0 : i32
    %80 = vector.broadcast %c0_i32_29 : i32 to vector<1x256xi32>
    %81 = arith.cmpi sge, %79, %80 : vector<1x256xi32>
    %c0_i32_30 = arith.constant 0 : i32
    %82 = vector.broadcast %c0_i32_30 : i32 to vector<1x256xi32>
    %83 = arith.addi %3, %82 : vector<1x256xi32>
    %c16_i32_31 = arith.constant 16 : i32
    %84 = vector.broadcast %c16_i32_31 : i32 to vector<1x256xi32>
    %85 = arith.cmpi slt, %83, %84 : vector<1x256xi32>
    %86 = arith.andi %81, %85 : vector<1x256xi1>
    %c-1_i32_32 = arith.constant -1 : i32
    %87 = vector.broadcast %c-1_i32_32 : i32 to vector<1x256xi32>
    %88 = arith.addi %4, %87 : vector<1x256xi32>
    %c0_i32_33 = arith.constant 0 : i32
    %89 = vector.broadcast %c0_i32_33 : i32 to vector<1x256xi32>
    %90 = arith.cmpi sge, %88, %89 : vector<1x256xi32>
    %91 = arith.andi %86, %90 : vector<1x256xi1>
    %c-1_i32_34 = arith.constant -1 : i32
    %92 = vector.broadcast %c-1_i32_34 : i32 to vector<1x256xi32>
    %93 = arith.addi %4, %92 : vector<1x256xi32>
    %c16_i32_35 = arith.constant 16 : i32
    %94 = vector.broadcast %c16_i32_35 : i32 to vector<1x256xi32>
    %95 = arith.cmpi slt, %93, %94 : vector<1x256xi32>
    %96 = arith.andi %91, %95 : vector<1x256xi1>
    %cst_36 = arith.constant 0.000000e+00 : f32
    %97 = vector.shape_cast %96 : vector<1x256xi1> to vector<1x256xi1>
    %98 = vector.broadcast %97 : vector<1x256xi1> to vector<4x256xi1>
    %99 = vector.broadcast %cst_36 : f32 to vector<4x256xf32>
    %100 = arith.select %98, %77, %99 : vector<4x256xi1>, vector<4x256xf32>
    %c0_i32_37 = arith.constant 0 : i32
    %101 = vector.broadcast %c0_i32_37 : i32 to vector<1x256xi32>
    %102 = arith.addi %3, %101 : vector<1x256xi32>
    %c0_i32_38 = arith.constant 0 : i32
    %103 = vector.broadcast %c0_i32_38 : i32 to vector<1x256xi32>
    %104 = arith.cmpi sge, %102, %103 : vector<1x256xi32>
    %c0_i32_39 = arith.constant 0 : i32
    %105 = vector.broadcast %c0_i32_39 : i32 to vector<1x256xi32>
    %106 = arith.addi %3, %105 : vector<1x256xi32>
    %c16_i32_40 = arith.constant 16 : i32
    %107 = vector.broadcast %c16_i32_40 : i32 to vector<1x256xi32>
    %108 = arith.cmpi slt, %106, %107 : vector<1x256xi32>
    %109 = arith.andi %104, %108 : vector<1x256xi1>
    %c0_i32_41 = arith.constant 0 : i32
    %110 = vector.broadcast %c0_i32_41 : i32 to vector<1x256xi32>
    %111 = arith.addi %4, %110 : vector<1x256xi32>
    %c0_i32_42 = arith.constant 0 : i32
    %112 = vector.broadcast %c0_i32_42 : i32 to vector<1x256xi32>
    %113 = arith.cmpi sge, %111, %112 : vector<1x256xi32>
    %114 = arith.andi %109, %113 : vector<1x256xi1>
    %c0_i32_43 = arith.constant 0 : i32
    %115 = vector.broadcast %c0_i32_43 : i32 to vector<1x256xi32>
    %116 = arith.addi %4, %115 : vector<1x256xi32>
    %c16_i32_44 = arith.constant 16 : i32
    %117 = vector.broadcast %c16_i32_44 : i32 to vector<1x256xi32>
    %118 = arith.cmpi slt, %116, %117 : vector<1x256xi32>
    %119 = arith.andi %114, %118 : vector<1x256xi1>
    %cst_45 = arith.constant 0.000000e+00 : f32
    %120 = vector.shape_cast %119 : vector<1x256xi1> to vector<1x256xi1>
    %121 = vector.broadcast %120 : vector<1x256xi1> to vector<4x256xi1>
    %122 = vector.broadcast %cst_45 : f32 to vector<4x256xf32>
    %123 = arith.select %121, %1, %122 : vector<4x256xi1>, vector<4x256xf32>
    %c255_i32 = arith.constant 255 : i32
    %124 = tpu.dynamic_rotate %1 by %c255_i32 dim 1 : vector<4x256xf32>, i32 -> vector<4x256xf32>
    %c0_i32_46 = arith.constant 0 : i32
    %125 = vector.broadcast %c0_i32_46 : i32 to vector<1x256xi32>
    %126 = arith.addi %3, %125 : vector<1x256xi32>
    %c0_i32_47 = arith.constant 0 : i32
    %127 = vector.broadcast %c0_i32_47 : i32 to vector<1x256xi32>
    %128 = arith.cmpi sge, %126, %127 : vector<1x256xi32>
    %c0_i32_48 = arith.constant 0 : i32
    %129 = vector.broadcast %c0_i32_48 : i32 to vector<1x256xi32>
    %130 = arith.addi %3, %129 : vector<1x256xi32>
    %c16_i32_49 = arith.constant 16 : i32
    %131 = vector.broadcast %c16_i32_49 : i32 to vector<1x256xi32>
    %132 = arith.cmpi slt, %130, %131 : vector<1x256xi32>
    %133 = arith.andi %128, %132 : vector<1x256xi1>
    %c1_i32_50 = arith.constant 1 : i32
    %134 = vector.broadcast %c1_i32_50 : i32 to vector<1x256xi32>
    %135 = arith.addi %4, %134 : vector<1x256xi32>
    %c0_i32_51 = arith.constant 0 : i32
    %136 = vector.broadcast %c0_i32_51 : i32 to vector<1x256xi32>
    %137 = arith.cmpi sge, %135, %136 : vector<1x256xi32>
    %138 = arith.andi %133, %137 : vector<1x256xi1>
    %c1_i32_52 = arith.constant 1 : i32
    %139 = vector.broadcast %c1_i32_52 : i32 to vector<1x256xi32>
    %140 = arith.addi %4, %139 : vector<1x256xi32>
    %c16_i32_53 = arith.constant 16 : i32
    %141 = vector.broadcast %c16_i32_53 : i32 to vector<1x256xi32>
    %142 = arith.cmpi slt, %140, %141 : vector<1x256xi32>
    %143 = arith.andi %138, %142 : vector<1x256xi1>
    %cst_54 = arith.constant 0.000000e+00 : f32
    %144 = vector.shape_cast %143 : vector<1x256xi1> to vector<1x256xi1>
    %145 = vector.broadcast %144 : vector<1x256xi1> to vector<4x256xi1>
    %146 = vector.broadcast %cst_54 : f32 to vector<4x256xf32>
    %147 = arith.select %145, %124, %146 : vector<4x256xi1>, vector<4x256xf32>
    %c241_i32 = arith.constant 241 : i32
    %148 = tpu.dynamic_rotate %1 by %c241_i32 dim 1 : vector<4x256xf32>, i32 -> vector<4x256xf32>
    %c1_i32_55 = arith.constant 1 : i32
    %149 = vector.broadcast %c1_i32_55 : i32 to vector<1x256xi32>
    %150 = arith.addi %3, %149 : vector<1x256xi32>
    %c0_i32_56 = arith.constant 0 : i32
    %151 = vector.broadcast %c0_i32_56 : i32 to vector<1x256xi32>
    %152 = arith.cmpi sge, %150, %151 : vector<1x256xi32>
    %c1_i32_57 = arith.constant 1 : i32
    %153 = vector.broadcast %c1_i32_57 : i32 to vector<1x256xi32>
    %154 = arith.addi %3, %153 : vector<1x256xi32>
    %c16_i32_58 = arith.constant 16 : i32
    %155 = vector.broadcast %c16_i32_58 : i32 to vector<1x256xi32>
    %156 = arith.cmpi slt, %154, %155 : vector<1x256xi32>
    %157 = arith.andi %152, %156 : vector<1x256xi1>
    %c-1_i32_59 = arith.constant -1 : i32
    %158 = vector.broadcast %c-1_i32_59 : i32 to vector<1x256xi32>
    %159 = arith.addi %4, %158 : vector<1x256xi32>
    %c0_i32_60 = arith.constant 0 : i32
    %160 = vector.broadcast %c0_i32_60 : i32 to vector<1x256xi32>
    %161 = arith.cmpi sge, %159, %160 : vector<1x256xi32>
    %162 = arith.andi %157, %161 : vector<1x256xi1>
    %c-1_i32_61 = arith.constant -1 : i32
    %163 = vector.broadcast %c-1_i32_61 : i32 to vector<1x256xi32>
    %164 = arith.addi %4, %163 : vector<1x256xi32>
    %c16_i32_62 = arith.constant 16 : i32
    %165 = vector.broadcast %c16_i32_62 : i32 to vector<1x256xi32>
    %166 = arith.cmpi slt, %164, %165 : vector<1x256xi32>
    %167 = arith.andi %162, %166 : vector<1x256xi1>
    %cst_63 = arith.constant 0.000000e+00 : f32
    %168 = vector.shape_cast %167 : vector<1x256xi1> to vector<1x256xi1>
    %169 = vector.broadcast %168 : vector<1x256xi1> to vector<4x256xi1>
    %170 = vector.broadcast %cst_63 : f32 to vector<4x256xf32>
    %171 = arith.select %169, %148, %170 : vector<4x256xi1>, vector<4x256xf32>
    %c240_i32 = arith.constant 240 : i32
    %172 = tpu.dynamic_rotate %1 by %c240_i32 dim 1 : vector<4x256xf32>, i32 -> vector<4x256xf32>
    %c1_i32_64 = arith.constant 1 : i32
    %173 = vector.broadcast %c1_i32_64 : i32 to vector<1x256xi32>
    %174 = arith.addi %3, %173 : vector<1x256xi32>
    %c0_i32_65 = arith.constant 0 : i32
    %175 = vector.broadcast %c0_i32_65 : i32 to vector<1x256xi32>
    %176 = arith.cmpi sge, %174, %175 : vector<1x256xi32>
    %c1_i32_66 = arith.constant 1 : i32
    %177 = vector.broadcast %c1_i32_66 : i32 to vector<1x256xi32>
    %178 = arith.addi %3, %177 : vector<1x256xi32>
    %c16_i32_67 = arith.constant 16 : i32
    %179 = vector.broadcast %c16_i32_67 : i32 to vector<1x256xi32>
    %180 = arith.cmpi slt, %178, %179 : vector<1x256xi32>
    %181 = arith.andi %176, %180 : vector<1x256xi1>
    %c0_i32_68 = arith.constant 0 : i32
    %182 = vector.broadcast %c0_i32_68 : i32 to vector<1x256xi32>
    %183 = arith.addi %4, %182 : vector<1x256xi32>
    %c0_i32_69 = arith.constant 0 : i32
    %184 = vector.broadcast %c0_i32_69 : i32 to vector<1x256xi32>
    %185 = arith.cmpi sge, %183, %184 : vector<1x256xi32>
    %186 = arith.andi %181, %185 : vector<1x256xi1>
    %c0_i32_70 = arith.constant 0 : i32
    %187 = vector.broadcast %c0_i32_70 : i32 to vector<1x256xi32>
    %188 = arith.addi %4, %187 : vector<1x256xi32>
    %c16_i32_71 = arith.constant 16 : i32
    %189 = vector.broadcast %c16_i32_71 : i32 to vector<1x256xi32>
    %190 = arith.cmpi slt, %188, %189 : vector<1x256xi32>
    %191 = arith.andi %186, %190 : vector<1x256xi1>
    %cst_72 = arith.constant 0.000000e+00 : f32
    %192 = vector.shape_cast %191 : vector<1x256xi1> to vector<1x256xi1>
    %193 = vector.broadcast %192 : vector<1x256xi1> to vector<4x256xi1>
    %194 = vector.broadcast %cst_72 : f32 to vector<4x256xf32>
    %195 = arith.select %193, %172, %194 : vector<4x256xi1>, vector<4x256xf32>
    %c239_i32 = arith.constant 239 : i32
    %196 = tpu.dynamic_rotate %1 by %c239_i32 dim 1 : vector<4x256xf32>, i32 -> vector<4x256xf32>
    %c1_i32_73 = arith.constant 1 : i32
    %197 = vector.broadcast %c1_i32_73 : i32 to vector<1x256xi32>
    %198 = arith.addi %3, %197 : vector<1x256xi32>
    %c0_i32_74 = arith.constant 0 : i32
    %199 = vector.broadcast %c0_i32_74 : i32 to vector<1x256xi32>
    %200 = arith.cmpi sge, %198, %199 : vector<1x256xi32>
    %c1_i32_75 = arith.constant 1 : i32
    %201 = vector.broadcast %c1_i32_75 : i32 to vector<1x256xi32>
    %202 = arith.addi %3, %201 : vector<1x256xi32>
    %c16_i32_76 = arith.constant 16 : i32
    %203 = vector.broadcast %c16_i32_76 : i32 to vector<1x256xi32>
    %204 = arith.cmpi slt, %202, %203 : vector<1x256xi32>
    %205 = arith.andi %200, %204 : vector<1x256xi1>
    %c1_i32_77 = arith.constant 1 : i32
    %206 = vector.broadcast %c1_i32_77 : i32 to vector<1x256xi32>
    %207 = arith.addi %4, %206 : vector<1x256xi32>
    %c0_i32_78 = arith.constant 0 : i32
    %208 = vector.broadcast %c0_i32_78 : i32 to vector<1x256xi32>
    %209 = arith.cmpi sge, %207, %208 : vector<1x256xi32>
    %210 = arith.andi %205, %209 : vector<1x256xi1>
    %c1_i32_79 = arith.constant 1 : i32
    %211 = vector.broadcast %c1_i32_79 : i32 to vector<1x256xi32>
    %212 = arith.addi %4, %211 : vector<1x256xi32>
    %c16_i32_80 = arith.constant 16 : i32
    %213 = vector.broadcast %c16_i32_80 : i32 to vector<1x256xi32>
    %214 = arith.cmpi slt, %212, %213 : vector<1x256xi32>
    %215 = arith.andi %210, %214 : vector<1x256xi1>
    %cst_81 = arith.constant 0.000000e+00 : f32
    %216 = vector.shape_cast %215 : vector<1x256xi1> to vector<1x256xi1>
    %217 = vector.broadcast %216 : vector<1x256xi1> to vector<4x256xi1>
    %218 = vector.broadcast %cst_81 : f32 to vector<4x256xf32>
    %219 = arith.select %217, %196, %218 : vector<4x256xi1>, vector<4x256xf32>
    %220 = tpu.concatenate %28, %52, %76, %100, %123, %147, %171, %195, %219 in 0 : vector<4x256xf32>, vector<4x256xf32>, vector<4x256xf32>, vector<4x256xf32>, vector<4x256xf32>, vector<4x256xf32>, vector<4x256xf32>, vector<4x256xf32>, vector<4x256xf32> -> vector<36x256xf32>
    %c0_82 = arith.constant 0 : index
    %c0_83 = arith.constant 0 : index
    %221 = vector.load %arg3[%c0_82, %c0_83] : memref<8x36xf32, #tpu.memory_space<vmem>>, vector<8x36xf32>
    %cst_84 = arith.constant dense<0.000000e+00> : vector<8x256xf32>
    %222 = tpu.matmul %221, %220, %cst_84 {dimension_numbers = #tpu.dot_dimension_numbers<[1], [0], [0], [1], [0, 0, 1, 1], [], []>} : vector<8x36xf32>, vector<36x256xf32>, vector<8x256xf32> -> vector<8x256xf32>
    %c0_85 = arith.constant 0 : index
    %c0_86 = arith.constant 0 : index
    %223 = vector.load %arg4[%c0_85, %c0_86] : memref<8x1xf32, #tpu.memory_space<vmem>>, vector<8x1xf32>
    %224 = vector.broadcast %223 : vector<8x1xf32> to vector<8x256xf32>
    %225 = arith.addf %222, %224 : vector<8x256xf32>
    %cst_87 = arith.constant 0.000000e+00 : f32
    %226 = vector.broadcast %cst_87 : f32 to vector<8x256xf32>
    %227 = arith.maximumf %225, %226 : vector<8x256xf32>
    %228 = tpu.concatenate %1, %227 in 0 : vector<4x256xf32>, vector<8x256xf32> -> vector<12x256xf32>
    %c0_88 = arith.constant 0 : index
    %c0_89 = arith.constant 0 : index
    %c0_90 = arith.constant 0 : index
    %229 = vector.load %arg5[%c0_88, %c0_89, %c0_90] : memref<1x12x256xf32, #tpu.memory_space<vmem>>, vector<1x12x256xf32>
    %230 = vector.shape_cast %229 : vector<1x12x256xf32> to vector<12x256xf32>
    %231 = vector.shape_cast %228 : vector<12x256xf32> to vector<1x12x256xf32>
    tpu.vector_store %arg5[%c0_88, %c0_89, %c0_90], %231 {strides = array<i32>} : memref<1x12x256xf32, #tpu.memory_space<vmem>>, vector<1x12x256xf32>,
    return
  }
  func.func @transform_0(%arg0: i32) -> (i32, i32) {
    %c0_i32 = arith.constant 0 : i32
    %c0_i32_0 = arith.constant 0 : i32
    %c0_i32_1 = arith.constant 0 : i32
    return %c0_i32, %c0_i32_0 : i32, i32
  }
  func.func @transform_1(%arg0: i32) -> (i32, i32, i32) {
    %c0_i32 = arith.constant 0 : i32
    %c0_i32_0 = arith.constant 0 : i32
    %c0_i32_1 = arith.constant 0 : i32
    return %arg0, %c0_i32, %c0_i32_0 : i32, i32, i32
  }
  func.func @transform_2(%arg0: i32) -> (i32, i32) {
    %c0_i32 = arith.constant 0 : i32
    %c0_i32_0 = arith.constant 0 : i32
    %c0_i32_1 = arith.constant 0 : i32
    return %c0_i32, %c0_i32_0 : i32, i32
  }
  func.func @transform_3(%arg0: i32) -> (i32, i32) {
    %c0_i32 = arith.constant 0 : i32
    %c0_i32_0 = arith.constant 0 : i32
    %c0_i32_1 = arith.constant 0 : i32
    return %c0_i32, %c0_i32_0 : i32, i32
  }
  func.func @transform_4(%arg0: i32) -> (i32, i32, i32) {
    %c0_i32 = arith.constant 0 : i32
    %c0_i32_0 = arith.constant 0 : i32
    %c0_i32_1 = arith.constant 0 : i32
    return %arg0, %c0_i32, %c0_i32_0 : i32, i32, i32
  }
}

</mosaic_0001>

<llo_original>
// kernel: tile.9
$region0: #{tile.9}
  %s0 = inlined_call_operand.vmem [shape: s32[16,16], index: 0, kind: input, shape index: {}]
  %s1 = inlined_call_operand.vmem [shape: s32[1,256], index: 1, kind: output, shape index: {}]
  $region1: #{tile.9} parent=0
    #allocation0 [shape = 'u8[8192]{0}', space=vmem, size = 0x2000, scoped, tag = 'scoped mem for output reshape']
    %s2 = smov 3
    %v3 = vld [vmem:[%s0] ss:$8 sm:%s2]
    %vm4 = vcmask 130048
    %5 = vst.msk [vmem:[#allocation0] ss:$8 sm:$0x3] %vm4, %v3
    %s6 = scalar_lea.vmem %s0, 7
    %s7 = smov 3
    %v8 = vld [vmem:[%s6] ss:$8 sm:%s7]
    %9 = vrot.lane.b32.xlu0 %v8, 112
    %v10 = vpop.permute.xlu0 %9
    %vm11 = vcmask 1048448
    %12 = vst.msk [vmem:[#allocation0] ss:$8 sm:$0x3] %vm11, %v10
    %s13 = scalar_lea.vmem %s0, 6
    %s14 = smov 3
    %v15 = vld [vmem:[%s13] ss:$8 sm:%s14]
    %16 = vrot.lane.b32.xlu0 %v15, 96
    %v17 = vpop.permute.xlu0 %16
    %vm18 = vcmask 917248
    %19 = vst.msk [vmem:[#allocation0] ss:$8 sm:$0x3] %vm18, %v17
    %s20 = scalar_lea.vmem %s0, 5
    %s21 = smov 3
    %v22 = vld [vmem:[%s20] ss:$8 sm:%s21]
    %23 = vrot.lane.b32.xlu0 %v22, 80
    %v24 = vpop.permute.xlu0 %23
    %vm25 = vcmask 786048
    %26 = vst.msk [vmem:[#allocation0] ss:$8 sm:$0x3] %vm25, %v24
    %s27 = scalar_lea.vmem %s0, 4
    %s28 = smov 3
    %v29 = vld [vmem:[%s27] ss:$8 sm:%s28]
    %30 = vrot.lane.b32.xlu0 %v29, 64
    %v31 = vpop.permute.xlu0 %30
    %vm32 = vcmask 654848
    %33 = vst.msk [vmem:[#allocation0] ss:$8 sm:$0x3] %vm32, %v31
    %s34 = scalar_lea.vmem %s0, 3
    %s35 = smov 3
    %v36 = vld [vmem:[%s34] ss:$8 sm:%s35]
    %37 = vrot.lane.b32.xlu0 %v36, 48
    %v38 = vpop.permute.xlu0 %37
    %vm39 = vcmask 523648
    %40 = vst.msk [vmem:[#allocation0] ss:$8 sm:$0x3] %vm39, %v38
    %s41 = scalar_lea.vmem %s0, 2
    %s42 = smov 3
    %v43 = vld [vmem:[%s41] ss:$8 sm:%s42]
    %44 = vrot.lane.b32.xlu0 %v43, 32
    %v45 = vpop.permute.xlu0 %44
    %vm46 = vcmask 392448
    %47 = vst.msk [vmem:[#allocation0] ss:$8 sm:$0x3] %vm46, %v45
    %s48 = scalar_lea.vmem %s0, 1
    %s49 = smov 3
    %v50 = vld [vmem:[%s48] ss:$8 sm:%s49]
    %51 = vrot.lane.b32.xlu0 %v50, 16
    %v52 = vpop.permute.xlu0 %51
    %vm53 = vcmask 261248
    %54 = vst.msk [vmem:[#allocation0] ss:$8 sm:$0x3] %vm53, %v52
    %s56 = ssub.s32 2, 1
    %v57 = vld [vmem:[#allocation0] sm:%s56]
    %s59 = ssub.s32 2, 1
    %60 = vst [vmem:[%s1] sm:%s59] %v57
    %s61 = scalar_lea.vmem [#allocation0], 8
    %v62 = vld [vmem:[%s61] sm:%s56]
    %s64 = ssub.s32 2, 1
    %s65 = scalar_lea.vmem %s1, 1
    %66 = vst [vmem:[%s65] sm:%s64] %v62

// kernel: basic_block_forward.1
$region0: #{basic_block_forward.1}
  #allocation0 [shape = 'u32[]', space=smem, size = 0x4, offset = 0x4, fixed_abs, tag = 'smem constant byte address 0x4 - core index']
  #allocation1 [shape = 'u32[72,128]{1,0:T(1,128)}', space=vmem, size = 0x9000, scoped, tag = 'internal scratch']
  %s0 = inlined_call_operand.vmem [shape: s32[2,256], index: 0, kind: input, shape index: {}]
  %s1 = inlined_call_operand.vmem [shape: f32[2,4,256], index: 1, kind: input, shape index: {}]
  %s2 = inlined_call_operand.vmem [shape: f32[8,36], index: 2, kind: input, shape index: {}]
  %s3 = inlined_call_operand.vmem [shape: f32[8,1], index: 3, kind: input, shape index: {}]
  %s4 = inlined_call_operand.vmem [shape: f32[2,12,256], index: 4, kind: output, shape index: {}]
  %s5 = sld [smem:[#allocation0]]
  $region49: #{basic_block_forward.1} parent=0
    _
  %s7 = ssub.s32 1, %s5
  %s8 = scalar_select 0, %s7, %s5
  loop: start=0, step=1, limit=4
  $region2: #{basic_block_forward.1} parent=0 // loop_pre_header
    _
  $region3: #{basic_block_forward.1} parent=0 // loop_header
    %s10 = sphi 0, %s14
    %p11 = scmp.ge.s32.totalorder %s10, 4
    %s18 = sphi 0, %s18
    %s20 = sphi 0, %s18
    %s21 = sphi 0, %s20
    %s35 = sphi 0, %s21
    %s41 = sphi 0, %s43
    %s44 = sphi 0, %s41
    %s45 = sphi 0, %s44
    %s61 = sphi 0, %s45
    %s65 = sphi 0, %s65
    %s67 = sphi 0, %s65
    %s68 = sphi 0, %s67
    %s82 = sphi 0, %s68
    %s86 = sphi 0, %s86
    %s88 = sphi 0, %s86
    %s89 = sphi 0, %s88
    %s103 = sphi 0, %s89
    %s109 = sphi 0, %s111
    %s112 = sphi 0, %s109
    %s113 = sphi 0, %s112
    %s129 = sphi 0, %s113
  $region4: #{basic_block_forward.1} parent=0 // loop_header_branch
    %13 = sbr.rel (%p11) target = $region8
  $region5: #{basic_block_forward.1} parent=0 // loop_body
    %s15 = ssub.s32 %s10, 1
    %s16 = ssub.s32 %s10, 2
    %s17 = sadd.s32 %s10, 1
    %s19 = sadd.s32 %s18, 1
    %p22 = scmp.eq.s32.totalorder %s10, 1
    %p23 = scmp.ne.s32.totalorder %s18, %s20
    %p24 = scmp.eq.s32.totalorder %s10, 0
    %p25 = por %p23, %p24
    %p26 = scmp.ne.s32.totalorder %s18, %s20
    %p27 = scmp.eq.s32.totalorder %s15, 1
    %p28 = por %p26, %p27
    %p29 = scmp.ne.s32.totalorder %s20, %s21
    %p30 = scmp.eq.s32.totalorder %s15, 0
    %p31 = por %p29, %p30
    %p32 = scmp.ne.s32.totalorder %s20, %s21
    %p33 = scmp.eq.s32.totalorder %s16, 1
    %p34 = por %p32, %p33
    %p36 = scmp.ne.s32.totalorder %s21, %s35
    %p37 = scmp.eq.s32.totalorder %s16, 0
    %p38 = por %p36, %p37
    %s39 = ssub.s32 %s10, %s17
    %p40 = scmp.eq.s32.totalorder %s39, 0
    %s42 = sadd.s32 %s41, 1
    %s43 = scalar_select %p40, %s41, %s42
    %p46 = pneg %p40
    %p47 = scmp.eq.s32.totalorder %s10, 1
    %p48 = por %p46, %p47
    %p49 = scmp.ne.s32.totalorder %s41, %s44
    %p50 = scmp.eq.s32.totalorder %s10, 0
    %p51 = por %p49, %p50
    %p52 = scmp.ne.s32.totalorder %s41, %s44
    %p53 = scmp.eq.s32.totalorder %s15, 1
    %p54 = por %p52, %p53
    %p55 = scmp.ne.s32.totalorder %s44, %s45
    %p56 = scmp.eq.s32.totalorder %s15, 0
    %p57 = por %p55, %p56
    %p58 = scmp.ne.s32.totalorder %s44, %s45
    %p59 = scmp.eq.s32.totalorder %s16, 1
    %p60 = por %p58, %p59
    %p62 = scmp.ne.s32.totalorder %s45, %s61
    %p63 = scmp.eq.s32.totalorder %s16, 0
    %p64 = por %p62, %p63
    %s66 = sadd.s32 %s65, 1
    %p69 = scmp.eq.s32.totalorder %s10, 1
    %p70 = scmp.ne.s32.totalorder %s65, %s67
    %p71 = scmp.eq.s32.totalorder %s10, 0
    %p72 = por %p70, %p71
    %p73 = scmp.ne.s32.totalorder %s65, %s67
    %p74 = scmp.eq.s32.totalorder %s15, 1
    %p75 = por %p73, %p74
    %p76 = scmp.ne.s32.totalorder %s67, %s68
    %p77 = scmp.eq.s32.totalorder %s15, 0
    %p78 = por %p76, %p77
    %p79 = scmp.ne.s32.totalorder %s67, %s68
    %p80 = scmp.eq.s32.totalorder %s16, 1
    %p81 = por %p79, %p80
    %p83 = scmp.ne.s32.totalorder %s68, %s82
    %p84 = scmp.eq.s32.totalorder %s16, 0
    %p85 = por %p83, %p84
    %s87 = sadd.s32 %s86, 1
    %p90 = scmp.eq.s32.totalorder %s10, 1
    %p91 = scmp.ne.s32.totalorder %s86, %s88
    %p92 = scmp.eq.s32.totalorder %s10, 0
    %p93 = por %p91, %p92
    %p94 = scmp.ne.s32.totalorder %s86, %s88
    %p95 = scmp.eq.s32.totalorder %s15, 1
    %p96 = por %p94, %p95
    %p97 = scmp.ne.s32.totalorder %s88, %s89
    %p98 = scmp.eq.s32.totalorder %s15, 0
    %p99 = por %p97, %p98
    %p100 = scmp.ne.s32.totalorder %s88, %s89
    %p101 = scmp.eq.s32.totalorder %s16, 1
    %p102 = por %p100, %p101
    %p104 = scmp.ne.s32.totalorder %s89, %s103
    %p105 = scmp.eq.s32.totalorder %s16, 0
    %p106 = por %p104, %p105
    %s107 = ssub.s32 %s10, %s17
    %p108 = scmp.eq.s32.totalorder %s107, 0
    %s110 = sadd.s32 %s109, 1
    %s111 = scalar_select %p108, %s109, %s110
    %p114 = pneg %p108
    %p115 = scmp.eq.s32.totalorder %s10, 1
    %p116 = por %p114, %p115
    %p117 = scmp.ne.s32.totalorder %s109, %s112
    %p118 = scmp.eq.s32.totalorder %s10, 0
    %p119 = por %p117, %p118
    %p120 = scmp.ne.s32.totalorder %s109, %s112
    %p121 = scmp.eq.s32.totalorder %s15, 1
    %p122 = por %p120, %p121
    %p123 = scmp.ne.s32.totalorder %s112, %s113
    %p124 = scmp.eq.s32.totalorder %s15, 0
    %p125 = por %p123, %p124
    %p126 = scmp.ne.s32.totalorder %s112, %s113
    %p127 = scmp.eq.s32.totalorder %s16, 1
    %p128 = por %p126, %p127
    %p130 = scmp.ne.s32.totalorder %s113, %s129
    %p131 = scmp.eq.s32.totalorder %s16, 0
    %p132 = por %p130, %p131
    %p133 = scmp.le.s32.totalorder 1, %s10
    %p134 = scmp.lt.s32.totalorder %s10, 3
    %p135 = pnand %p133, %p134
    %p136 = pneg %p135
    // Predicated region
    $region9: #{basic_block_forward.1} parent=5 // pred_check
      _
    $region10: #{basic_block_forward.1} parent=5 // pred_check_branch
      %138 = sbr.rel (%p135) target = $region12
    $region11: #{basic_block_forward.1} parent=5 // pred_region
      %s139 = ssub.s32 %s10, 1
      // Predicated region
      $region13: #{basic_block_forward.1} parent=11 // pred_check
        %p140 = pneg %p31
      $region14: #{basic_block_forward.1} parent=11 // pred_check_branch
        %142 = sbr.rel (%p140) target = $region16
      $region15: #{basic_block_forward.1} parent=11 // pred_region
        _
      $region16: #{basic_block_forward.1} parent=11 // pred_fallthru
        _
      // Predicated region
      $region17: #{basic_block_forward.1} parent=11 // pred_check
        %p143 = pneg %p78
      $region18: #{basic_block_forward.1} parent=11 // pred_check_branch
        %145 = sbr.rel (%p143) target = $region20
      $region19: #{basic_block_forward.1} parent=11 // pred_region
        _
      $region20: #{basic_block_forward.1} parent=11 // pred_fallthru
        _
      // Predicated region
      $region21: #{basic_block_forward.1} parent=11 // pred_check
        %p146 = pneg %p99
      $region22: #{basic_block_forward.1} parent=11 // pred_check_branch
        %148 = sbr.rel (%p146) target = $region24
      $region23: #{basic_block_forward.1} parent=11 // pred_region
        _
      $region24: #{basic_block_forward.1} parent=11 // pred_fallthru
        _
    $region12: #{basic_block_forward.1} parent=5 // pred_fallthru
      _
    %p149 = scmp.lt.s32.totalorder %s10, 2
    // Predicated region
    $region25: #{basic_block_forward.1} parent=5 // pred_check
      %p150 = pneg %p149
    $region26: #{basic_block_forward.1} parent=5 // pred_check_branch
      %152 = sbr.rel (%p150) target = $region28
    $region27: #{basic_block_forward.1} parent=5 // pred_region
      // Predicated region
      $region29: #{basic_block_forward.1} parent=27 // pred_check
        %p153 = pneg %p51
      $region30: #{basic_block_forward.1} parent=27 // pred_check_branch
        %155 = sbr.rel (%p153) target = $region32
      $region31: #{basic_block_forward.1} parent=27 // pred_region
        %p156 = scmp.lt.s32.totalorder %s10, 1
        %s157 = scalar_select %p156, %s10, 1
        %s158 = smul.addr %s157, 2
        %s159 = smul.addr %s158, 4
        %s160 = scalar_lea.vmem %s1, %s159
      $region32: #{basic_block_forward.1} parent=27 // pred_fallthru
        _
    $region28: #{basic_block_forward.1} parent=5 // pred_fallthru
      _
    %p161 = scmp.le.s32.totalorder 1, %s10
    %p162 = scmp.lt.s32.totalorder %s10, 3
    %p163 = pnand %p161, %p162
    %p164 = pneg %p163
    // Predicated region
    $region33: #{basic_block_forward.1} parent=5 // pred_check
      _
    $region34: #{basic_block_forward.1} parent=5 // pred_check_branch
      %166 = sbr.rel (%p163) target = $region36
    $region35: #{basic_block_forward.1} parent=5 // pred_region
      %s167 = ssub.s32 %s10, 1
      %p168 = pneg %p31
      %p169 = pneg %p28
      %p170 = scmp.lt.s32.totalorder %s15, 1
      %s171 = scalar_select %p170, %s15, 1
      %s172 = smul.addr %s171, 2
      %s173 = smul.addr %s172, 4
      %s174 = scalar_lea.vmem %s1, %s173
      %p175 = pneg %p57
      %p176 = pneg %p54
      %p177 = pneg %p78
      %p178 = pneg %p75
      %p179 = pneg %p99
      %p180 = pneg %p96
      %p181 = pneg %p125
      %p182 = pneg %p122
      %p183 = scmp.lt.s32.totalorder %s15, 1
      %s184 = scalar_select %p183, %s15, 1
      %s185 = smul.addr %s184, 4
      %s186 = smul.addr %s185, 8
      %s187 = scalar_lea.vmem %s4, %s186
      %p188 = scmp.lt.s32.totalorder %s15, 1
      %s189 = scalar_select %p188, %s15, 1
      %s190 = smul.addr %s189, 2
      %s191 = smul.addr %s190, 4
      %s192 = scalar_lea.vmem %s1, %s191
      %p193 = scmp.lt.s32.totalorder %s15, 1
      %s194 = scalar_select %p193, %s15, 1
      %s195 = smul.addr %s194, 4
      %s196 = smul.addr %s195, 8
      %s197 = scalar_lea.vmem %s4, %s196
      %v198 = vld [vmem:[%s192] sm:$0xff]
      %v199 = vld [vmem:[%s0] sm:$0xf]
      %201 = vst [vmem:[#allocation1] ss:$2 sm:$0xff] %v198
      %v202 = vld.sshfl [vmem:[#allocation1] sm:$0xff pattern:$0x75316420]
      %v203 = vld.sshfl [vmem:[#allocation1 + $0x8] sm:$0xff pattern:$0x75316420]
      %206 = vrot.lane.b32.xlu0 %v202, 17
      %v207 = vpop.permute.xlu0 %206
      %208 = vrot.lane.b32.xlu0 %v203, 17
      %v209 = vpop.permute.xlu0 %208
      %v210 = vlaneseq
      %v211 = vand.u32 %v210, 127
      %vm212 = vcmp.lt.s32.totalorder %v211, 17
      %v213 = vsel %vm212, %v207, %v209
      %v214 = vsel %vm212, %v209, %v207
      %v215 = vadd.s32 %v199, 4294967295
      %vm216 = vcmp.ge.s32.totalorder %v215, 0
      %vm217 = vcmp.lt.s32.totalorder %v215, 16
      %vm218 = vmand %vm216, %vm217
      %v219 = vsel %vm216, 1, 0
      %v220 = vrot.slane %v219, 7
      %v221 = vrot.slane %v220, 2
      %vm222 = vcmp.ne.s32.totalorder %v221, 0
      %vm223 = vmand %vm218, %vm222
      %v224 = vsel %vm217, 1, 0
      %v225 = vrot.slane %v224, 7
      %v226 = vrot.slane %v225, 2
      %vm227 = vcmp.ne.s32.totalorder %v226, 0
      %vm228 = vmand %vm223, %vm227
      %v229 = vsel %vm228, 1, 0
      %v230 = vperm.slane %v229, 0
      %v231 = vperm.slane %v229, 2
      %v232 = vperm.slane %v230, 0
      %v233 = vperm.slane %v231, 0
      %vm234 = vcmp.eq.s32.totalorder %v232, 1
      %vm235 = vcmp.eq.s32.totalorder %v233, 1
      %v236 = vsel %vm234, %v214, 0.0
      %v237 = vsel %vm235, %v213, 0.0
      %238 = vst [vmem:[#allocation1] ss:$2 sm:$0xff] %v198
      %v239 = vld.sshfl [vmem:[#allocation1] sm:$0xff pattern:$0x75316420]
      %v240 = vld.sshfl [vmem:[#allocation1 + $0x8] sm:$0xff pattern:$0x75316420]
      %243 = vrot.lane.b32.xlu0 %v239, 16
      %v244 = vpop.permute.xlu0 %243
      %245 = vrot.lane.b32.xlu0 %v240, 16
      %v246 = vpop.permute.xlu0 %245
      %vm247 = vcmp.lt.s32.totalorder %v211, 16
      %v248 = vsel %vm247, %v244, %v246
      %v249 = vsel %vm247, %v246, %v244
      %vm250 = vcmp.ge.s32.totalorder %v199, 0
      %v251 = vsel %vm250, 1, 0
      %v252 = vrot.slane %v251, 7
      %v253 = vrot.slane %v252, 2
      %vm254 = vcmp.ne.s32.totalorder %v253, 0
      %vm255 = vmand %vm218, %vm254
      %vm256 = vcmp.lt.s32.totalorder %v199, 16
      %v257 = vsel %vm256, 1, 0
      %v258 = vrot.slane %v257, 7
      %v259 = vrot.slane %v258, 2
      %vm260 = vcmp.ne.s32.totalorder %v259, 0
      %vm261 = vmand %vm255, %vm260
      %v262 = vsel %vm261, 1, 0
      %v263 = vperm.slane %v262, 0
      %v264 = vperm.slane %v262, 2
      %v265 = vperm.slane %v263, 0
      %v266 = vperm.slane %v264, 0
      %vm267 = vcmp.eq.s32.totalorder %v265, 1
      %vm268 = vcmp.eq.s32.totalorder %v266, 1
      %v269 = vsel %vm267, %v249, 0.0
      %v270 = vsel %vm268, %v248, 0.0
      %271 = vst [vmem:[#allocation1] ss:$2 sm:$0xff] %v198
      %v272 = vld.sshfl [vmem:[#allocation1] sm:$0xff pattern:$0x75316420]
      %v273 = vld.sshfl [vmem:[#allocation1 + $0x8] sm:$0xff pattern:$0x75316420]
      %276 = vrot.lane.b32.xlu0 %v272, 15
      %v277 = vpop.permute.xlu0 %276
      %278 = vrot.lane.b32.xlu0 %v273, 15
      %v279 = vpop.permute.xlu0 %278
      %vm280 = vcmp.lt.s32.totalorder %v211, 15
      %v281 = vsel %vm280, %v277, %v279
      %v282 = vsel %vm280, %v279, %v277
      %v283 = vadd.s32 %v199, 1
      %vm284 = vcmp.ge.s32.totalorder %v283, 0
      %v285 = vsel %vm284, 1, 0
      %v286 = vrot.slane %v285, 7
      %v287 = vrot.slane %v286, 2
      %vm288 = vcmp.ne.s32.totalorder %v287, 0
      %vm289 = vmand %vm218, %vm288
      %vm290 = vcmp.lt.s32.totalorder %v283, 16
      %v291 = vsel %vm290, 1, 0
      %v292 = vrot.slane %v291, 7
      %v293 = vrot.slane %v292, 2
      %vm294 = vcmp.ne.s32.totalorder %v293, 0
      %vm295 = vmand %vm289, %vm294
      %v296 = vsel %vm295, 1, 0
      %v297 = vperm.slane %v296, 0
      %v298 = vperm.slane %v296, 2
      %v299 = vperm.slane %v297, 0
      %v300 = vperm.slane %v298, 0
      %vm301 = vcmp.eq.s32.totalorder %v299, 1
      %vm302 = vcmp.eq.s32.totalorder %v300, 1
      %v303 = vsel %vm301, %v282, 0.0
      %v304 = vsel %vm302, %v281, 0.0
      %305 = vst [vmem:[#allocation1] ss:$2 sm:$0xff] %v198
      %v306 = vld.sshfl [vmem:[#allocation1] sm:$0xff pattern:$0x75316420]
      %v307 = vld.sshfl [vmem:[#allocation1 + $0x8] sm:$0xff pattern:$0x75316420]
      %310 = vrot.lane.b32.xlu0 %v306, 1
      %v311 = vpop.permute.xlu0 %310
      %312 = vrot.lane.b32.xlu0 %v307, 1
      %v313 = vpop.permute.xlu0 %312
      %vm314 = vcmp.lt.s32.totalorder %v211, 1
      %v315 = vsel %vm314, %v311, %v313
      %v316 = vsel %vm314, %v313, %v311
      %vm317 = vmand %vm250, %vm256
      %vm318 = vmand %vm317, %vm222
      %vm319 = vmand %vm318, %vm227
      %v320 = vsel %vm319, 1, 0
      %v321 = vperm.slane %v320, 0
      %v322 = vperm.slane %v320, 2
      %v323 = vperm.slane %v321, 0
      %v324 = vperm.slane %v322, 0
      %vm325 = vcmp.eq.s32.totalorder %v323, 1
      %vm326 = vcmp.eq.s32.totalorder %v324, 1
      %v327 = vsel %vm325, %v316, 0.0
      %v328 = vsel %vm326, %v315, 0.0
      %vm329 = vmand %vm317, %vm254
      %vm330 = vmand %vm329, %vm260
      %v331 = vsel %vm330, 1, 0
      %v332 = vperm.slane %v331, 0
      %v333 = vperm.slane %v331, 2
      %v334 = vperm.slane %v332, 0
      %v335 = vperm.slane %v333, 0
      %vm336 = vcmp.eq.s32.totalorder %v334, 1
      %vm337 = vcmp.eq.s32.totalorder %v335, 1
      %338 = vst [vmem:[#allocation1] ss:$2 sm:$0xff] %v198
      %v339 = vld.sshfl [vmem:[#allocation1] sm:$0xff pattern:$0x75316420]
      %v340 = vld.sshfl [vmem:[#allocation1 + $0x8] sm:$0xff pattern:$0x75316420]
      %v343 = vsel %vm336, %v339, 0.0
      %v344 = vsel %vm337, %v340, 0.0
      %345 = vst [vmem:[#allocation1] ss:$2 sm:$0xff] %v198
      %v346 = vld.sshfl [vmem:[#allocation1] sm:$0xff pattern:$0x75316420]
      %v347 = vld.sshfl [vmem:[#allocation1 + $0x8] sm:$0xff pattern:$0x75316420]
      %350 = vrot.lane.b32.xlu0 %v346, 127
      %v351 = vpop.permute.xlu0 %350
      %352 = vrot.lane.b32.xlu0 %v347, 127
      %v353 = vpop.permute.xlu0 %352
      %vm354 = vcmp.lt.s32.totalorder %v211, 127
      %v355 = vsel %vm354, %v351, %v353
      %v356 = vsel %vm354, %v353, %v351
      %vm357 = vmand %vm317, %vm288
      %vm358 = vmand %vm357, %vm294
      %v359 = vsel %vm358, 1, 0
      %v360 = vperm.slane %v359, 0
      %v361 = vperm.slane %v359, 2
      %v362 = vperm.slane %v360, 0
      %v363 = vperm.slane %v361, 0
      %vm364 = vcmp.eq.s32.totalorder %v362, 1
      %vm365 = vcmp.eq.s32.totalorder %v363, 1
      %v366 = vsel %vm364, %v355, 0.0
      %v367 = vsel %vm365, %v356, 0.0
      %368 = vst [vmem:[#allocation1] ss:$2 sm:$0xff] %v198
      %v369 = vld.sshfl [vmem:[#allocation1] sm:$0xff pattern:$0x75316420]
      %v370 = vld.sshfl [vmem:[#allocation1 + $0x8] sm:$0xff pattern:$0x75316420]
      %373 = vrot.lane.b32.xlu0 %v369, 113
      %v374 = vpop.permute.xlu0 %373
      %375 = vrot.lane.b32.xlu0 %v370, 113
      %v376 = vpop.permute.xlu0 %375
      %vm377 = vcmp.lt.s32.totalorder %v211, 113
      %v378 = vsel %vm377, %v374, %v376
      %v379 = vsel %vm377, %v376, %v374
      %vm380 = vmand %vm284, %vm290
      %vm381 = vmand %vm380, %vm222
      %vm382 = vmand %vm381, %vm227
      %v383 = vsel %vm382, 1, 0
      %v384 = vperm.slane %v383, 0
      %v385 = vperm.slane %v383, 2
      %v386 = vperm.slane %v384, 0
      %v387 = vperm.slane %v385, 0
      %vm388 = vcmp.eq.s32.totalorder %v386, 1
      %vm389 = vcmp.eq.s32.totalorder %v387, 1
      %v390 = vsel %vm388, %v378, 0.0
      %v391 = vsel %vm389, %v379, 0.0
      %392 = vst [vmem:[#allocation1] ss:$2 sm:$0xff] %v198
      %v393 = vld.sshfl [vmem:[#allocation1] sm:$0xff pattern:$0x75316420]
      %v394 = vld.sshfl [vmem:[#allocation1 + $0x8] sm:$0xff pattern:$0x75316420]
      %397 = vrot.lane.b32.xlu0 %v393, 112
      %v398 = vpop.permute.xlu0 %397
      %399 = vrot.lane.b32.xlu0 %v394, 112
      %v400 = vpop.permute.xlu0 %399
      %vm401 = vcmp.lt.s32.totalorder %v211, 112
      %v402 = vsel %vm401, %v398, %v400
      %v403 = vsel %vm401, %v400, %v398
      %vm404 = vmand %vm380, %vm254
      %vm405 = vmand %vm404, %vm260
      %v406 = vsel %vm405, 1, 0
      %v407 = vperm.slane %v406, 0
      %v408 = vperm.slane %v406, 2
      %v409 = vperm.slane %v407, 0
      %v410 = vperm.slane %v408, 0
      %vm411 = vcmp.eq.s32.totalorder %v409, 1
      %vm412 = vcmp.eq.s32.totalorder %v410, 1
      %v413 = vsel %vm411, %v402, 0.0
      %v414 = vsel %vm412, %v403, 0.0
      %415 = vst [vmem:[#allocation1] ss:$2 sm:$0xff] %v198
      %v416 = vld.sshfl [vmem:[#allocation1] sm:$0xff pattern:$0x75316420]
      %v417 = vld.sshfl [vmem:[#allocation1 + $0x8] sm:$0xff pattern:$0x75316420]
      %420 = vrot.lane.b32.xlu0 %v416, 111
      %v421 = vpop.permute.xlu0 %420
      %422 = vrot.lane.b32.xlu0 %v417, 111
      %v423 = vpop.permute.xlu0 %422
      %vm424 = vcmp.lt.s32.totalorder %v211, 111
      %v425 = vsel %vm424, %v421, %v423
      %v426 = vsel %vm424, %v423, %v421
      %vm427 = vmand %vm380, %vm288
      %vm428 = vmand %vm427, %vm294
      %v429 = vsel %vm428, 1, 0
      %v430 = vperm.slane %v429, 0
      %v431 = vperm.slane %v429, 2
      %v432 = vperm.slane %v430, 0
      %v433 = vperm.slane %v431, 0
      %vm434 = vcmp.eq.s32.totalorder %v432, 1
      %vm435 = vcmp.eq.s32.totalorder %v433, 1
      %v436 = vsel %vm434, %v425, 0.0
      %v437 = vsel %vm435, %v426, 0.0
      %v440 = vrot.slane %v269, 4
      %v441 = vrot.slane %v270, 4
      %v446 = vrot.slane %v327, 4
      %v447 = vrot.slane %v328, 4
      %v452 = vrot.slane %v366, 4
      %v453 = vrot.slane %v367, 4
      %v458 = vrot.slane %v413, 4
      %v459 = vrot.slane %v414, 4
      %vm462 = vcmask 1043456
      %v463 = vsel %vm462, %v236, %v440
      %v464 = vsel %vm462, %v237, %v441
      %v465 = vsel %vm462, %v303, %v446
      %v466 = vsel %vm462, %v304, %v447
      %v467 = vsel %vm462, %v343, %v452
      %v468 = vsel %vm462, %v344, %v453
      %v469 = vsel %vm462, %v390, %v458
      %v470 = vsel %vm462, %v391, %v459
      %v471 = vld [vmem:[%s2] sm:$0xff]
      %v472 = vld [vmem:[%s3] sm:$0xff]
      %474 = vset.pattern.permute.xlu0 0
      %475 = vperm.xlu0 %474, %v472
      %v476 = vpop.permute.xlu0 %475
      %vm478 = vcmask 293888
      %v480 = vsel %vm478, %v471, 0
      %v483 = vsel %vm462, %v436, 0
      %v486 = vsel %vm462, %v437, 0
      %488 = vmatpush.msra.mxu0 0.0
      %489 = vmatpush.msra.mxu0 0.0
      %490 = vmatpush.msra.mxu0 0.0
      %491 = vmatpush.msra.mxu0 0.0
      %492 = vmatpush.msra.mxu0 0.0
      %493 = vmatpush.msra.mxu0 0.0
      %494 = vmatpush.msra.mxu0 0.0
      %495 = vmatpush.msra.mxu0 0.0
      %496 = vmatpush.msra.mxu0 0.0
      %497 = vmatpush.msra.mxu0 0.0
      %498 = vmatpush.msra.mxu0 0.0
      %499 = vmatpush.msra.mxu0 %v483
      %500 = vmatpush.msra.mxu0 %v469
      %501 = vmatpush.msra.mxu0 %v467
      %502 = vmatpush.msra.mxu0 %v465
      %503 = vmatpush.msra.mxu0 %v463
      %504 = vmatmul.f32.gmra.mxu0 %v480
      %v505 = vpop.f32.mrf.mxu0
      %v506 = vadd.f32 %v476, %v505
      %507 = vdwg.mxu0
      %508 = vmatpush.msra.mxu0 0.0
      %509 = vmatpush.msra.mxu0 0.0
      %510 = vmatpush.msra.mxu0 0.0
      %511 = vmatpush.msra.mxu0 0.0
      %512 = vmatpush.msra.mxu0 0.0
      %513 = vmatpush.msra.mxu0 0.0
      %514 = vmatpush.msra.mxu0 0.0
      %515 = vmatpush.msra.mxu0 0.0
      %516 = vmatpush.msra.mxu0 0.0
      %517 = vmatpush.msra.mxu0 0.0
      %518 = vmatpush.msra.mxu0 0.0
      %519 = vmatpush.msra.mxu0 %v486
      %520 = vmatpush.msra.mxu0 %v470
      %521 = vmatpush.msra.mxu0 %v468
      %522 = vmatpush.msra.mxu0 %v466
      %523 = vmatpush.msra.mxu0 %v464
      %524 = vmatmul.f32.gmra.mxu0 %v480
      %v525 = vpop.f32.mrf.mxu0
      %v526 = vadd.f32 %v476, %v525
      %527 = vdwg.mxu0
      %v528 = vmax.f32 %v506, 0.0
      %v529 = vmax.f32 %v526, 0.0
      %530 = vst [vmem:[#allocation1] ss:$2 sm:$0xff] %v198
      %v531 = vld.sshfl [vmem:[#allocation1] sm:$0xff pattern:$0x75316420]
      %v532 = vld.sshfl [vmem:[#allocation1 + $0x8] sm:$0xff pattern:$0x75316420]
      %v537 = vrot.slane %v528, 4
      %v538 = vrot.slane %v529, 4
      %v541 = vsel %vm462, %v531, %v537
      %v542 = vsel %vm462, %v532, %v538
      %543 = vst [vmem:[%s197] sm:$0xff] %v541
      %544 = vst [vmem:[%s197 + $0x8] sm:$0xff] %v542
      %545 = vst [vmem:[%s197 + $0x10] sm:$0xf] %v537
      %546 = vst [vmem:[%s197 + $0x18] sm:$0xf] %v538
      %p547 = scmp.lt.s32.totalorder %s15, 1
      %s548 = scalar_select %p547, %s15, 1
      %s549 = smul.addr %s548, 4
      %s550 = smul.addr %s549, 8
      %s551 = scalar_lea.vmem %s4, %s550
      // Predicated region
      $region37: #{basic_block_forward.1} parent=35 // pred_check
        %p552 = pneg %p122
      $region38: #{basic_block_forward.1} parent=35 // pred_check_branch
        %554 = sbr.rel (%p552) target = $region40
      $region39: #{basic_block_forward.1} parent=35 // pred_region
        _
      $region40: #{basic_block_forward.1} parent=35 // pred_fallthru
        _
    $region36: #{basic_block_forward.1} parent=5 // pred_fallthru
      _
    %p555 = scmp.le.s32.totalorder 2, %s10
    // Predicated region
    $region41: #{basic_block_forward.1} parent=5 // pred_check
      %p556 = pneg %p555
    $region42: #{basic_block_forward.1} parent=5 // pred_check_branch
      %558 = sbr.rel (%p556) target = $region44
    $region43: #{basic_block_forward.1} parent=5 // pred_region
      %s559 = ssub.s32 %s10, 2
      // Predicated region
      $region45: #{basic_block_forward.1} parent=43 // pred_check
        %p560 = pneg %p128
      $region46: #{basic_block_forward.1} parent=43 // pred_check_branch
        %562 = sbr.rel (%p560) target = $region48
      $region47: #{basic_block_forward.1} parent=43 // pred_region
        %p563 = scmp.lt.s32.totalorder %s16, 1
        %s564 = scalar_select %p563, %s16, 1
        %s565 = smul.addr %s564, 4
        %s566 = smul.addr %s565, 8
        %s567 = scalar_lea.vmem %s4, %s566
      $region48: #{basic_block_forward.1} parent=43 // pred_fallthru
        _
    $region44: #{basic_block_forward.1} parent=5 // pred_fallthru
      _
  $region6: #{basic_block_forward.1} parent=0 // loop_footer
    %s14 = sadd.s32 1, %s10
  $region7: #{basic_block_forward.1} parent=0 // loop_footer_branch
    %9 = sbr.rel target = $region3
  $region8: #{basic_block_forward.1} parent=0 // loop_exit
    _

</llo_original>
